<compile_context>
chip_gen: v5e
topology: v5e:2x2
jax: 0.10.0
libtpu: 0.0.40
codegen_flags: <defaults>
</compile_context>

<pallas_src>
import numpy as np
import jax
import jax.numpy as jnp
from jax.experimental import pallas as pl
from jax.experimental.pallas import tpu as pltpu

# ----------------------------- config (small) -------------------------------
B = 2          # batch
S = 8          # sequence length
D = 32         # d_model
H = 4          # n_heads
DKV = 8        # key_value_proj_dim (d_kv)
INNER = H * DKV
EPS = 1e-6     # layer_norm_epsilon
NUM_BUCKETS = 32
MAX_DISTANCE = 128


# ------------------------------ Pallas kernel -------------------------------
def mrt5_self_attn_kernel(hidden_ref, w3_ref, wo_ref, bias_ref, gate_ref,
                          out_ref):
    # hidden_ref: (B*S, D)       flattened hidden states (residual input)
    # w3_ref:     (H, D, 3*DKV)  per-head fused [Wq_h | Wk_h | Wv_h], ln_w folded
    # wo_ref:     (H*B, DKV, D)  per-(head,batch) output projection, head-major
    # bias_ref:   (H*B, S, S)    position_bias + attention_mask, head-major
    # gate_ref:   (B, S)         delete-gate mask (added along the key axis)
    # out_ref:    (B*S, D)
    x = hidden_ref[...]                                             # fp32

    # --- T5LayerNorm (RMS); the learned scale is folded into w3 host-side ---
    inv_rms = jax.lax.rsqrt(jnp.mean(x * x, axis=-1, keepdims=True) + EPS)
    normed = x * inv_rms                                            # (B*S, D)

    # --- per-head fused QKV projection: one batched MXU einsum (H pushes) ---
    # (broadcasting x over heads avoids any lane->sublane relayout of the
    #  projection result; at these sizes the extra tiny pushes are cheaper
    #  and lower more robustly than an in-kernel transpose)
    xb = jnp.broadcast_to(normed[None], (H, B * S, D))              # (H, B*S, D)
    qkv = jnp.einsum('hmd,hdk->hmk', xb, w3_ref[...],
                     preferred_element_type=jnp.float32)            # (H, B*S, 3*DKV)

    # Head-major q/k/v as (H*B, S, DKV); leading-axis reshapes only.
    q = qkv[:, :, 0 * DKV:1 * DKV].reshape(H * B, S, DKV)
    k = qkv[:, :, 1 * DKV:2 * DKV].reshape(H * B, S, DKV)
    v = qkv[:, :, 2 * DKV:3 * DKV].reshape(H * B, S, DKV)

    # --- scores + (position bias + mask) + delete gate: single batched pass ---
    s = jnp.einsum('xqd,xkd->xqk', q, k,
                   preferred_element_type=jnp.float32)               # (H*B, S, S)
    g = jnp.broadcast_to(gate_ref[...][None, :, None, :], (H, B, 1, S))
    s = s + bias_ref[...] + g.reshape(H * B, 1, S)

    # --- softmax over keys (fp32), one fused max/exp/sum for all heads ---
    m = jnp.max(s, axis=-1, keepdims=True)
    p = jnp.exp(s - m)
    attn = p * pl.reciprocal(jnp.sum(p, axis=-1, keepdims=True), approx=False)

    ctx = jnp.einsum('xqk,xkd->xqd', attn, v,
                     preferred_element_type=jnp.float32)             # (H*B, S, DKV)

    # --- heads contracted straight into the output (no lane-axis concat) ---
    per_head = jnp.einsum('xqd,xdo->xqo', ctx, wo_ref[...],
                          preferred_element_type=jnp.float32)        # (H*B, S, D)
    attn_out = jnp.sum(per_head.reshape(H, B * S, D), axis=0)        # (B*S, D)

    # --- residual (dropout = identity in eval mode) ---
    out_ref[...] = x + attn_out


# ------------------------- per-call jitted wrapper ---------------------------
def _vmem_spec():
    return pl.BlockSpec(memory_space=pltpu.MemorySpace.VMEM)


@jax.jit
def _mrt5_self_attn_fwd(hidden, delete_gate_mask, w3, wo_hb, bias_hb):
    hidden2d = hidden.reshape(B * S, D)          # free relabel under jit
    gate2d = delete_gate_mask[:, :, 0]           # (B, S)
    out2d = pl.pallas_call(
        mrt5_self_attn_kernel,
        out_shape=jax.ShapeDtypeStruct((B * S, D), jnp.float32),
        in_specs=[_vmem_spec() for _ in range(5)],
        out_specs=_vmem_spec(),
        input_output_aliases={0: 0},             # donate hidden buffer
    )(hidden2d, w3, wo_hb, bias_hb, gate2d)
    return out2d.reshape(B, S, D)


# ------------------- one-time (init-time) parameter prep --------------------
def prepare_mrt5_params(ln_w, wq, wk, wv, wo, pos_bias_masked):
    """Hoisted prep: fold ln_w into QKV, reorder weights & bias head-major."""
    def per_head(w):                              # (D, INNER) -> (H, D, DKV)
        return jnp.transpose((ln_w[:, None] * w).reshape(D, H, DKV), (1, 0, 2))
    w3 = jnp.concatenate([per_head(wq), per_head(wk), per_head(wv)], axis=-1)
    wo_h = wo.reshape(H, DKV, D)                                     # head-major rows
    wo_hb = jnp.broadcast_to(wo_h[:, None], (H, B, DKV, D)).reshape(H * B, DKV, D)
    bias_hb = jnp.transpose(pos_bias_masked, (1, 0, 2, 3)).reshape(H * B, S, S)
    return w3, wo_hb, bias_hb


def mrt5_layer_self_attention(hidden, delete_gate_mask, prepared, pos_bias_masked):
    """Returns (hidden_states, present_key_value_state, position_bias)."""
    out = _mrt5_self_attn_fwd(hidden, delete_gate_mask, *prepared)
    return out, None, pos_bias_masked


# --------------------- glue: T5 relative position bias ----------------------
def _relative_position_bucket(relative_position, num_buckets=NUM_BUCKETS,
                              max_distance=MAX_DISTANCE):
    # bidirectional (encoder) variant of T5Attention._relative_position_bucket
    num_buckets //= 2
    relative_buckets = (relative_position > 0).astype(jnp.int32) * num_buckets
    relative_position = jnp.abs(relative_position)
    max_exact = num_buckets // 2
    is_small = relative_position < max_exact
    rp = jnp.maximum(relative_position, 1).astype(jnp.float32)
    relative_position_if_large = max_exact + (
        jnp.log(rp / max_exact) / np.log(max_distance / max_exact)
        * (num_buckets - max_exact)
    ).astype(jnp.int32)
    relative_position_if_large = jnp.minimum(relative_position_if_large,
                                             num_buckets - 1)
    relative_buckets += jnp.where(is_small, relative_position,
                                  relative_position_if_large)
    return relative_buckets


def compute_position_bias(rel_attn_bias, q_len, k_len):
    context_position = jnp.arange(q_len)[:, None]
    memory_position = jnp.arange(k_len)[None, :]
    relative_position = memory_position - context_position          # (q, k)
    buckets = _relative_position_bucket(relative_position)          # (q, k)
    values = rel_attn_bias[buckets]                                  # (q, k, H)
    return jnp.transpose(values, (2, 0, 1))[None]                    # (1, H, q, k)


# --------------------------- pure-JAX reference ------------------------------
def ref_forward(hidden, ln_w, wq, wk, wv, wo, pos_bias_masked, dg):
    var = jnp.mean(hidden * hidden, axis=-1, keepdims=True)
    normed = hidden * jax.lax.rsqrt(var + EPS) * ln_w
    q = (normed @ wq).reshape(B, S, H, DKV).transpose(0, 2, 1, 3)
    k = (normed @ wk).reshape(B, S, H, DKV).transpose(0, 2, 1, 3)
    v = (normed @ wv).reshape(B, S, H, DKV).transpose(0, 2, 1, 3)
    scores = jnp.einsum('bhqd,bhkd->bhqk', q, k)
    scores = scores + pos_bias_masked
    scores = scores + dg[:, :, 0][:, None, None, :]        # delete gate (keys)
    attn = jax.nn.softmax(scores, axis=-1)
    ctx = jnp.einsum('bhqk,bhkd->bhqd', attn, v)
    ctx = ctx.transpose(0, 2, 1, 3).reshape(B, S, INNER)
    return hidden + ctx @ wo


# ---------------------------------- main -------------------------------------
if __name__ == "__main__":
    key = jax.random.PRNGKey(0)
    keys = jax.random.split(key, 8)

    hidden = jax.random.normal(keys[0], (B, S, D), dtype=jnp.float32)

    # parameters (deterministic init; T5-style linears have no bias)
    ln_w = jnp.ones((D,), dtype=jnp.float32)
    wq = jax.random.normal(keys[1], (D, INNER), dtype=jnp.float32) * 0.02
    wk = jax.random.normal(keys[2], (D, INNER), dtype=jnp.float32) * 0.02
    wv = jax.random.normal(keys[3], (D, INNER), dtype=jnp.float32) * 0.02
    wo = jax.random.normal(keys[4], (INNER, D), dtype=jnp.float32) * 0.02
    rel_attn_bias = jax.random.normal(keys[5], (NUM_BUCKETS, H),
                                      dtype=jnp.float32) * 0.02

    # attention mask: all positions valid -> extended mask of zeros (B,1,1,S)
    attn_mask = jnp.ones((B, S), dtype=jnp.float32)
    ext_mask = (1.0 - attn_mask)[:, None, None, :] * -1e9

    # position_bias (+ mask), exactly as MrT5Attention builds it before adding
    # to the scores; this is also the tensor returned as outputs[2].
    pos_bias = compute_position_bias(rel_attn_bias, S, S)            # (1,H,S,S)
    pos_bias_masked = pos_bias + ext_mask                            # (B,H,S,S)

    # delete gate mask: log-sigmoid gate values (<= 0), module shape (B, S, 1)
    gate_logits = jax.random.normal(keys[6], (B, S), dtype=jnp.float32)
    delete_gate_mask = jax.nn.log_sigmoid(gate_logits)[:, :, None]   # (B,S,1)

    # --- one-time hoisted prep (parameter init time) ---
    prepared = prepare_mrt5_params(ln_w, wq, wk, wv, wo, pos_bias_masked)
    prepared = jax.tree_util.tree_map(jax.block_until_ready, prepared)

    # --- hot path: single jit'd call wrapping one pallas_call ---
    out, present_kv, returned_bias = mrt5_layer_self_attention(
        hidden, delete_gate_mask, prepared, pos_bias_masked)
    out = jax.block_until_ready(out)

    # verify against a pure-JAX reference (full-precision matmuls)
    with jax.default_matmul_precision("highest"):
        ref = ref_forward(hidden, ln_w, wq, wk, wv, wo,
                          pos_bias_masked, delete_gate_mask)
        ref = jax.block_until_ready(ref)
    np.testing.assert_allclose(np.asarray(out), np.asarray(ref),
                               rtol=1e-4, atol=1e-4)

    # module output tuple: (hidden_states, present_key_value_state, position_bias)
    outputs = (out, present_kv, returned_bias)
    print("KERNEL_OK")
</pallas_src>

<mosaic_0001>
module attributes {stable_mosaic.version = 11 : i64} {
  func.func @mrt5_self_attn_kernel(%arg0: memref<16x32xf32, #tpu.memory_space<vmem>>, %arg1: memref<4x32x24xf32, #tpu.memory_space<vmem>>, %arg2: memref<8x8x32xf32, #tpu.memory_space<vmem>>, %arg3: memref<8x8x8xf32, #tpu.memory_space<vmem>>, %arg4: memref<2x8xf32, #tpu.memory_space<vmem>>, %arg5: memref<16x32xf32, #tpu.memory_space<vmem>>) attributes {dimension_semantics = [], scalar_prefetch = 0 : i64, scratch_operands = 0 : i64, tpu.core_type = #tpu.core_type<tc>} {
    %c0 = arith.constant 0 : index
    %c0_0 = arith.constant 0 : index
    %0 = vector.load %arg0[%c0, %c0_0] : memref<16x32xf32, #tpu.memory_space<vmem>>, vector<16x32xf32>
    %1 = arith.mulf %0, %0 : vector<16x32xf32>
    %cst = arith.constant dense<0.000000e+00> : vector<16xf32>
    %2 = vector.multi_reduction <add>, %1, %cst [1] : vector<16x32xf32> to vector<16xf32>
    %3 = vector.shape_cast %2 : vector<16xf32> to vector<16x1xf32>
    %cst_1 = arith.constant 3.200000e+01 : f32
    %4 = vector.broadcast %cst_1 : f32 to vector<16x1xf32>
    %5 = arith.divf %3, %4 : vector<16x1xf32>
    %cst_2 = arith.constant 9.99999997E-7 : f32
    %6 = vector.broadcast %cst_2 : f32 to vector<16x1xf32>
    %7 = arith.addf %5, %6 : vector<16x1xf32>
    %8 = math.rsqrt %7 : vector<16x1xf32>
    %9 = vector.broadcast %8 : vector<16x1xf32> to vector<16x32xf32>
    %10 = arith.mulf %0, %9 : vector<16x32xf32>
    %11 = vector.shape_cast %10 : vector<16x32xf32> to vector<1x16x32xf32>
    %12 = vector.shape_cast %11 : vector<1x16x32xf32> to vector<1x16x32xf32>
    %13 = vector.broadcast %12 : vector<1x16x32xf32> to vector<4x16x32xf32>
    %c0_3 = arith.constant 0 : index
    %c0_4 = arith.constant 0 : index
    %c0_5 = arith.constant 0 : index
    %14 = vector.load %arg1[%c0_3, %c0_4, %c0_5] : memref<4x32x24xf32, #tpu.memory_space<vmem>>, vector<4x32x24xf32>
    "tpu.trace_start"() <{level = 10 : i32, message = "hmd,hdk->hmk"}> : () -> ()
    %cst_6 = arith.constant dense<0.000000e+00> : vector<4x16x24xf32>
    %15 = tpu.matmul %13, %14, %cst_6 {dimension_numbers = #tpu.dot_dimension_numbers<[2], [1], [1], [2], [0, 0, 0, 1, 1, 2], [0], [0]>} : vector<4x16x32xf32>, vector<4x32x24xf32>, vector<4x16x24xf32> -> vector<4x16x24xf32>
    "tpu.trace_stop"() : () -> ()
    %16 = vector.extract_strided_slice %15 {offsets = [0, 0, 0], sizes = [4, 16, 8], strides = [1, 1, 1]} : vector<4x16x24xf32> to vector<4x16x8xf32>
    %17 = vector.shape_cast %16 : vector<4x16x8xf32> to vector<8x8x8xf32>
    %18 = vector.extract_strided_slice %15 {offsets = [0, 0, 8], sizes = [4, 16, 8], strides = [1, 1, 1]} : vector<4x16x24xf32> to vector<4x16x8xf32>
    %19 = vector.shape_cast %18 : vector<4x16x8xf32> to vector<8x8x8xf32>
    %20 = vector.extract_strided_slice %15 {offsets = [0, 0, 16], sizes = [4, 16, 8], strides = [1, 1, 1]} : vector<4x16x24xf32> to vector<4x16x8xf32>
    %21 = vector.shape_cast %20 : vector<4x16x8xf32> to vector<8x8x8xf32>
    "tpu.trace_start"() <{level = 10 : i32, message = "xqd,xkd->xqk"}> : () -> ()
    %cst_7 = arith.constant dense<0.000000e+00> : vector<8x8x8xf32>
    %22 = tpu.matmul %17, %19, %cst_7 {dimension_numbers = #tpu.dot_dimension_numbers<[2], [2], [1], [1], [0, 0, 0, 1, 1, 1], [0], [0]>} : vector<8x8x8xf32>, vector<8x8x8xf32>, vector<8x8x8xf32> -> vector<8x8x8xf32>
    "tpu.trace_stop"() : () -> ()
    %c0_8 = arith.constant 0 : index
    %c0_9 = arith.constant 0 : index
    %23 = vector.load %arg4[%c0_8, %c0_9] : memref<2x8xf32, #tpu.memory_space<vmem>>, vector<2x8xf32>
    %24 = vector.shape_cast %23 : vector<2x8xf32> to vector<1x2x1x8xf32>
    %25 = vector.shape_cast %24 : vector<1x2x1x8xf32> to vector<1x2x1x8xf32>
    %26 = vector.broadcast %25 : vector<1x2x1x8xf32> to vector<4x2x1x8xf32>
    %c0_10 = arith.constant 0 : index
    %c0_11 = arith.constant 0 : index
    %c0_12 = arith.constant 0 : index
    %27 = vector.load %arg3[%c0_10, %c0_11, %c0_12] : memref<8x8x8xf32, #tpu.memory_space<vmem>>, vector<8x8x8xf32>
    %28 = arith.addf %22, %27 : vector<8x8x8xf32>
    %29 = vector.shape_cast %26 : vector<4x2x1x8xf32> to vector<8x1x8xf32>
    %30 = vector.broadcast %29 : vector<8x1x8xf32> to vector<8x8x8xf32>
    %31 = arith.addf %28, %30 : vector<8x8x8xf32>
    %cst_13 = arith.constant dense<0xFF800000> : vector<8x8xf32>
    %32 = vector.multi_reduction <maximumf>, %31, %cst_13 [2] : vector<8x8x8xf32> to vector<8x8xf32>
    %33 = vector.shape_cast %32 : vector<8x8xf32> to vector<8x8x1xf32>
    %34 = vector.broadcast %33 : vector<8x8x1xf32> to vector<8x8x8xf32>
    %35 = arith.subf %31, %34 : vector<8x8x8xf32>
    %36 = math.exp %35 : vector<8x8x8xf32>
    %cst_14 = arith.constant dense<0.000000e+00> : vector<8x8xf32>
    %37 = vector.multi_reduction <add>, %36, %cst_14 [2] : vector<8x8x8xf32> to vector<8x8xf32>
    %38 = vector.shape_cast %37 : vector<8x8xf32> to vector<8x8x1xf32>
    %39 = tpu.reciprocal %38 : vector<8x8x1xf32> -> vector<8x8x1xf32>
    %40 = vector.broadcast %39 : vector<8x8x1xf32> to vector<8x8x8xf32>
    %41 = arith.mulf %36, %40 : vector<8x8x8xf32>
    "tpu.trace_start"() <{level = 10 : i32, message = "xqk,xkd->xqd"}> : () -> ()
    %cst_15 = arith.constant dense<0.000000e+00> : vector<8x8x8xf32>
    %42 = tpu.matmul %41, %21, %cst_15 {dimension_numbers = #tpu.dot_dimension_numbers<[2], [1], [1], [2], [0, 0, 0, 1, 1, 2], [0], [0]>} : vector<8x8x8xf32>, vector<8x8x8xf32>, vector<8x8x8xf32> -> vector<8x8x8xf32>
    "tpu.trace_stop"() : () -> ()
    %c0_16 = arith.constant 0 : index
    %c0_17 = arith.constant 0 : index
    %c0_18 = arith.constant 0 : index
    %43 = vector.load %arg2[%c0_16, %c0_17, %c0_18] : memref<8x8x32xf32, #tpu.memory_space<vmem>>, vector<8x8x32xf32>
    "tpu.trace_start"() <{level = 10 : i32, message = "xqd,xdo->xqo"}> : () -> ()
    %cst_19 = arith.constant dense<0.000000e+00> : vector<8x8x32xf32>
    %44 = tpu.matmul %42, %43, %cst_19 {dimension_numbers = #tpu.dot_dimension_numbers<[2], [1], [1], [2], [0, 0, 0, 1, 1, 2], [0], [0]>} : vector<8x8x8xf32>, vector<8x8x32xf32>, vector<8x8x32xf32> -> vector<8x8x32xf32>
    "tpu.trace_stop"() : () -> ()
    %45 = vector.shape_cast %44 : vector<8x8x32xf32> to vector<4x16x32xf32>
    %cst_20 = arith.constant dense<0.000000e+00> : vector<16x32xf32>
    %46 = vector.multi_reduction <add>, %45, %cst_20 [0] : vector<4x16x32xf32> to vector<16x32xf32>
    %47 = arith.addf %0, %46 : vector<16x32xf32>
    %c0_21 = arith.constant 0 : index
    %c0_22 = arith.constant 0 : index
    %48 = vector.load %arg5[%c0_21, %c0_22] : memref<16x32xf32, #tpu.memory_space<vmem>>, vector<16x32xf32>
    tpu.vector_store %arg5[%c0_21, %c0_22], %47 {strides = array<i32>} : memref<16x32xf32, #tpu.memory_space<vmem>>, vector<16x32xf32>,
    return
  }
}

</mosaic_0001>

<llo_original>
// kernel: _mrt5_self_attn_fwd.1
$region0: #{_mrt5_self_attn_fwd.1}
  #allocation0 [shape = 'u32[]', space=smem, size = 0x4, offset = 0x4, fixed_abs, tag = 'smem constant byte address 0x4 - core index']
  #allocation1 [shape = 'u32[72,128]{1,0:T(1,128)}', space=vmem, size = 0x9000, scoped, tag = 'internal scratch']
  %s0 = inlined_call_operand.vmem [shape: f32[16,32], index: 0, kind: input, shape index: {}, may-alias: {0,5}]
  %s1 = inlined_call_operand.vmem [shape: f32[4,32,24], index: 1, kind: input, shape index: {}]
  %s2 = inlined_call_operand.vmem [shape: f32[8,8,32], index: 2, kind: input, shape index: {}]
  %s3 = inlined_call_operand.vmem [shape: f32[8,8,8], index: 3, kind: input, shape index: {}]
  %s4 = inlined_call_operand.vmem [shape: f32[2,8], index: 4, kind: input, shape index: {}]
  %s5 = inlined_call_operand.vmem [shape: f32[16,32], index: 5, kind: output, shape index: {}, may-alias: {0,5}]
  %s6 = sld [smem:[#allocation0]]
  $region30: #{_mrt5_self_attn_fwd.1} parent=0
    _
  %s8 = ssub.s32 1, %s6
  %s9 = scalar_select 0, %s8, %s6
  // Predicated region
  $region2: #{_mrt5_self_attn_fwd.1} parent=0 // pred_check
    _
  $region3: #{_mrt5_self_attn_fwd.1} parent=0 // pred_check_branch
    %11 = sbr.rel (0) target = $region5
  $region4: #{_mrt5_self_attn_fwd.1} parent=0 // pred_region
    _
  $region5: #{_mrt5_self_attn_fwd.1} parent=0 // pred_fallthru
    _
  // Predicated region
  $region6: #{_mrt5_self_attn_fwd.1} parent=0 // pred_check
    _
  $region7: #{_mrt5_self_attn_fwd.1} parent=0 // pred_check_branch
    %13 = sbr.rel (0) target = $region9
  $region8: #{_mrt5_self_attn_fwd.1} parent=0 // pred_region
    _
  $region9: #{_mrt5_self_attn_fwd.1} parent=0 // pred_fallthru
    _
  // Predicated region
  $region10: #{_mrt5_self_attn_fwd.1} parent=0 // pred_check
    _
  $region11: #{_mrt5_self_attn_fwd.1} parent=0 // pred_check_branch
    %15 = sbr.rel (0) target = $region13
  $region12: #{_mrt5_self_attn_fwd.1} parent=0 // pred_region
    _
  $region13: #{_mrt5_self_attn_fwd.1} parent=0 // pred_fallthru
    _
  // Predicated region
  $region14: #{_mrt5_self_attn_fwd.1} parent=0 // pred_check
    _
  $region15: #{_mrt5_self_attn_fwd.1} parent=0 // pred_check_branch
    %17 = sbr.rel (0) target = $region17
  $region16: #{_mrt5_self_attn_fwd.1} parent=0 // pred_region
    _
  $region17: #{_mrt5_self_attn_fwd.1} parent=0 // pred_fallthru
    _
  // Predicated region
  $region18: #{_mrt5_self_attn_fwd.1} parent=0 // pred_check
    _
  $region19: #{_mrt5_self_attn_fwd.1} parent=0 // pred_check_branch
    %19 = sbr.rel (0) target = $region21
  $region20: #{_mrt5_self_attn_fwd.1} parent=0 // pred_region
    _
  $region21: #{_mrt5_self_attn_fwd.1} parent=0 // pred_fallthru
    _
  %v20 = vld [vmem:[%s0] sm:$0xff]
  %v21 = vld [vmem:[%s0 + $0x8] sm:$0xff]
  %v22 = vmul.f32 %v20, %v20
  %v23 = vmul.f32 %v21, %v21
  %vm24 = vcmask 261120
  %v25 = vsel %vm24, %v22, 0.0
  %26 = vadd.xlane.f32.xlu0 %v25
  %v27 = vpop.xlane.xlu0 %26
  %v28 = vsel %vm24, %v23, 0.0
  %29 = vadd.xlane.f32.xlu0 %v28
  %v30 = vpop.xlane.xlu0 %29
  %v31 = vrcp.pop 32.0
  %v32 = vmul.f32 32.0, %v31
  %v33 = vsub.f32 1.0, %v32
  %v34 = vmul.f32 %v31, %v33
  %v35 = vadd.f32 %v31, %v34
  %vm36 = vweird.f32 %v31
  %v37 = vsel %vm36, %v31, %v35
  %v38 = vmul.f32 %v27, %v37
  %v39 = vmul.f32 %v30, %v37
  %v40 = vadd.f32 %v38, 1e-06
  %v41 = vadd.f32 %v39, 1e-06
  %v42 = vrsqrt.pop %v40
  %v43 = vmul.f32 %v42, %v40
  %v44 = vmul.f32 %v43, %v42
  %v45 = vmul.f32 0.5, %v44
  %v46 = vsub.f32 1.5, %v45
  %v47 = vmul.f32 %v42, %v46
  %vm48 = vweird.f32 %v40
  %vm49 = vweird.f32 %v42
  %vm50 = vmor %vm48, %vm49
  %v51 = vsel %vm50, %v42, %v47
  %v52 = vrsqrt.pop %v41
  %v53 = vmul.f32 %v52, %v41
  %v54 = vmul.f32 %v53, %v52
  %v55 = vmul.f32 0.5, %v54
  %v56 = vsub.f32 1.5, %v55
  %v57 = vmul.f32 %v52, %v56
  %vm58 = vweird.f32 %v41
  %vm59 = vweird.f32 %v52
  %vm60 = vmor %vm58, %vm59
  %v61 = vsel %vm60, %v52, %v57
  %v62 = vmul.f32 %v20, %v51
  %v63 = vmul.f32 %v21, %v61
  %v64 = vld [vmem:[%s1] sm:$0xff]
  %v65 = vld [vmem:[%s1 + $0x8] sm:$0xff]
  %v66 = vld [vmem:[%s1 + $0x10] sm:$0xff]
  %v67 = vld [vmem:[%s1 + $0x18] sm:$0xff]
  %v68 = vld [vmem:[%s1 + $0x20] sm:$0xff]
  %v69 = vld [vmem:[%s1 + $0x28] sm:$0xff]
  %v70 = vld [vmem:[%s1 + $0x30] sm:$0xff]
  %v71 = vld [vmem:[%s1 + $0x38] sm:$0xff]
  %v72 = vld [vmem:[%s1 + $0x40] sm:$0xff]
  %v73 = vld [vmem:[%s1 + $0x48] sm:$0xff]
  %v74 = vld [vmem:[%s1 + $0x50] sm:$0xff]
  %v75 = vld [vmem:[%s1 + $0x58] sm:$0xff]
  %v76 = vld [vmem:[%s1 + $0x60] sm:$0xff]
  %v77 = vld [vmem:[%s1 + $0x68] sm:$0xff]
  %v78 = vld [vmem:[%s1 + $0x70] sm:$0xff]
  %v79 = vld [vmem:[%s1 + $0x78] sm:$0xff]
  %v81 = vsel %vm24, %v62, 0
  %v84 = vsel %vm24, %v63, 0
  %86 = vmatpush.msra.mxu0 0.0
  %87 = vmatpush.msra.mxu0 0.0
  %88 = vmatpush.msra.mxu0 0.0
  %89 = vmatpush.msra.mxu0 0.0
  %90 = vmatpush.msra.mxu0 0.0
  %91 = vmatpush.msra.mxu0 0.0
  %92 = vmatpush.msra.mxu0 0.0
  %93 = vmatpush.msra.mxu0 0.0
  %94 = vmatpush.msra.mxu0 0.0
  %95 = vmatpush.msra.mxu0 0.0
  %96 = vmatpush.msra.mxu0 0.0
  %97 = vmatpush.msra.mxu0 0.0
  %98 = vmatpush.msra.mxu0 %v67
  %99 = vmatpush.msra.mxu0 %v66
  %100 = vmatpush.msra.mxu0 %v65
  %101 = vmatpush.msra.mxu0 %v64
  %102 = vmatmul.f32.gmra.mxu0 %v81
  %v103 = vpop.f32.mrf.mxu0
  %v104 = vadd.f32 0.0, %v103
  %105 = vmatmul.f32.gmra.mxu0 %v84
  %v106 = vpop.f32.mrf.mxu0
  %v107 = vadd.f32 0.0, %v106
  %108 = vdwg.mxu0
  %109 = vmatpush.msra.mxu0 0.0
  %110 = vmatpush.msra.mxu0 0.0
  %111 = vmatpush.msra.mxu0 0.0
  %112 = vmatpush.msra.mxu0 0.0
  %113 = vmatpush.msra.mxu0 0.0
  %114 = vmatpush.msra.mxu0 0.0
  %115 = vmatpush.msra.mxu0 0.0
  %116 = vmatpush.msra.mxu0 0.0
  %117 = vmatpush.msra.mxu0 0.0
  %118 = vmatpush.msra.mxu0 0.0
  %119 = vmatpush.msra.mxu0 0.0
  %120 = vmatpush.msra.mxu0 0.0
  %121 = vmatpush.msra.mxu0 %v71
  %122 = vmatpush.msra.mxu0 %v70
  %123 = vmatpush.msra.mxu0 %v69
  %124 = vmatpush.msra.mxu0 %v68
  %125 = vmatmul.f32.gmra.mxu0 %v81
  %v126 = vpop.f32.mrf.mxu0
  %v127 = vadd.f32 0.0, %v126
  %128 = vmatmul.f32.gmra.mxu0 %v84
  %v129 = vpop.f32.mrf.mxu0
  %v130 = vadd.f32 0.0, %v129
  %131 = vdwg.mxu0
  %132 = vmatpush.msra.mxu0 0.0
  %133 = vmatpush.msra.mxu0 0.0
  %134 = vmatpush.msra.mxu0 0.0
  %135 = vmatpush.msra.mxu0 0.0
  %136 = vmatpush.msra.mxu0 0.0
  %137 = vmatpush.msra.mxu0 0.0
  %138 = vmatpush.msra.mxu0 0.0
  %139 = vmatpush.msra.mxu0 0.0
  %140 = vmatpush.msra.mxu0 0.0
  %141 = vmatpush.msra.mxu0 0.0
  %142 = vmatpush.msra.mxu0 0.0
  %143 = vmatpush.msra.mxu0 0.0
  %144 = vmatpush.msra.mxu0 %v75
  %145 = vmatpush.msra.mxu0 %v74
  %146 = vmatpush.msra.mxu0 %v73
  %147 = vmatpush.msra.mxu0 %v72
  %148 = vmatmul.f32.gmra.mxu0 %v81
  %v149 = vpop.f32.mrf.mxu0
  %v150 = vadd.f32 0.0, %v149
  %151 = vmatmul.f32.gmra.mxu0 %v84
  %v152 = vpop.f32.mrf.mxu0
  %v153 = vadd.f32 0.0, %v152
  %154 = vdwg.mxu0
  %155 = vmatpush.msra.mxu0 0.0
  %156 = vmatpush.msra.mxu0 0.0
  %157 = vmatpush.msra.mxu0 0.0
  %158 = vmatpush.msra.mxu0 0.0
  %159 = vmatpush.msra.mxu0 0.0
  %160 = vmatpush.msra.mxu0 0.0
  %161 = vmatpush.msra.mxu0 0.0
  %162 = vmatpush.msra.mxu0 0.0
  %163 = vmatpush.msra.mxu0 0.0
  %164 = vmatpush.msra.mxu0 0.0
  %165 = vmatpush.msra.mxu0 0.0
  %166 = vmatpush.msra.mxu0 0.0
  %167 = vmatpush.msra.mxu0 %v79
  %168 = vmatpush.msra.mxu0 %v78
  %169 = vmatpush.msra.mxu0 %v77
  %170 = vmatpush.msra.mxu0 %v76
  %171 = vmatmul.f32.gmra.mxu0 %v81
  %v172 = vpop.f32.mrf.mxu0
  %v173 = vadd.f32 0.0, %v172
  %174 = vmatmul.f32.gmra.mxu0 %v84
  %v175 = vpop.f32.mrf.mxu0
  %v176 = vadd.f32 0.0, %v175
  %177 = vdwg.mxu0
  %v178 = vld [vmem:[%s4] sm:$0x3]
  %v180 = vrot.slane %v178, 1
  %v181 = vld [vmem:[%s3] sm:$0xff]
  %v182 = vld [vmem:[%s3 + $0x8] sm:$0xff]
  %v183 = vld [vmem:[%s3 + $0x10] sm:$0xff]
  %v184 = vld [vmem:[%s3 + $0x18] sm:$0xff]
  %v185 = vld [vmem:[%s3 + $0x20] sm:$0xff]
  %v186 = vld [vmem:[%s3 + $0x28] sm:$0xff]
  %v187 = vld [vmem:[%s3 + $0x30] sm:$0xff]
  %v188 = vld [vmem:[%s3 + $0x38] sm:$0xff]
  %190 = vrot.lane.b32.xlu0 %v104, 120
  %v191 = vpop.permute.xlu0 %190
  %vm192 = vcmask 64512
  %v193 = vsel %vm192, %v104, 0
  %v195 = vsel %vm192, %v191, 0
  %197 = vmatpush.xpose.msra.mxu0 0.0
  %198 = vmatpush.xpose.msra.mxu0 0.0
  %199 = vmatpush.xpose.msra.mxu0 0.0
  %200 = vmatpush.xpose.msra.mxu0 0.0
  %201 = vmatpush.xpose.msra.mxu0 0.0
  %202 = vmatpush.xpose.msra.mxu0 0.0
  %203 = vmatpush.xpose.msra.mxu0 0.0
  %204 = vmatpush.xpose.msra.mxu0 0.0
  %205 = vmatpush.xpose.msra.mxu0 0.0
  %206 = vmatpush.xpose.msra.mxu0 0.0
  %207 = vmatpush.xpose.msra.mxu0 0.0
  %208 = vmatpush.xpose.msra.mxu0 0.0
  %209 = vmatpush.xpose.msra.mxu0 0.0
  %210 = vmatpush.xpose.msra.mxu0 0.0
  %211 = vmatpush.xpose.msra.mxu0 0.0
  %212 = vmatpush.xpose.msra.mxu0 %v195
  %213 = vmatmul.f32.gmra.mxu0 %v193
  %v214 = vpop.f32.mrf.mxu0
  %v215 = vadd.f32 %v181, %v214
  %216 = vdwg.mxu0
  %218 = vrot.lane.b32.xlu0 %v107, 120
  %v219 = vpop.permute.xlu0 %218
  %v220 = vsel %vm192, %v107, 0
  %v222 = vsel %vm192, %v219, 0
  %224 = vmatpush.xpose.msra.mxu0 0.0
  %225 = vmatpush.xpose.msra.mxu0 0.0
  %226 = vmatpush.xpose.msra.mxu0 0.0
  %227 = vmatpush.xpose.msra.mxu0 0.0
  %228 = vmatpush.xpose.msra.mxu0 0.0
  %229 = vmatpush.xpose.msra.mxu0 0.0
  %230 = vmatpush.xpose.msra.mxu0 0.0
  %231 = vmatpush.xpose.msra.mxu0 0.0
  %232 = vmatpush.xpose.msra.mxu0 0.0
  %233 = vmatpush.xpose.msra.mxu0 0.0
  %234 = vmatpush.xpose.msra.mxu0 0.0
  %235 = vmatpush.xpose.msra.mxu0 0.0
  %236 = vmatpush.xpose.msra.mxu0 0.0
  %237 = vmatpush.xpose.msra.mxu0 0.0
  %238 = vmatpush.xpose.msra.mxu0 0.0
  %239 = vmatpush.xpose.msra.mxu0 %v222
  %240 = vmatmul.f32.gmra.mxu0 %v220
  %v241 = vpop.f32.mrf.mxu0
  %v242 = vadd.f32 %v182, %v241
  %243 = vdwg.mxu0
  %245 = vrot.lane.b32.xlu0 %v127, 120
  %v246 = vpop.permute.xlu0 %245
  %v247 = vsel %vm192, %v127, 0
  %v249 = vsel %vm192, %v246, 0
  %251 = vmatpush.xpose.msra.mxu0 0.0
  %252 = vmatpush.xpose.msra.mxu0 0.0
  %253 = vmatpush.xpose.msra.mxu0 0.0
  %254 = vmatpush.xpose.msra.mxu0 0.0
  %255 = vmatpush.xpose.msra.mxu0 0.0
  %256 = vmatpush.xpose.msra.mxu0 0.0
  %257 = vmatpush.xpose.msra.mxu0 0.0
  %258 = vmatpush.xpose.msra.mxu0 0.0
  %259 = vmatpush.xpose.msra.mxu0 0.0
  %260 = vmatpush.xpose.msra.mxu0 0.0
  %261 = vmatpush.xpose.msra.mxu0 0.0
  %262 = vmatpush.xpose.msra.mxu0 0.0
  %263 = vmatpush.xpose.msra.mxu0 0.0
  %264 = vmatpush.xpose.msra.mxu0 0.0
  %265 = vmatpush.xpose.msra.mxu0 0.0
  %266 = vmatpush.xpose.msra.mxu0 %v249
  %267 = vmatmul.f32.gmra.mxu0 %v247
  %v268 = vpop.f32.mrf.mxu0
  %v269 = vadd.f32 %v183, %v268
  %270 = vdwg.mxu0
  %272 = vrot.lane.b32.xlu0 %v130, 120
  %v273 = vpop.permute.xlu0 %272
  %v274 = vsel %vm192, %v130, 0
  %v276 = vsel %vm192, %v273, 0
  %278 = vmatpush.xpose.msra.mxu0 0.0
  %279 = vmatpush.xpose.msra.mxu0 0.0
  %280 = vmatpush.xpose.msra.mxu0 0.0
  %281 = vmatpush.xpose.msra.mxu0 0.0
  %282 = vmatpush.xpose.msra.mxu0 0.0
  %283 = vmatpush.xpose.msra.mxu0 0.0
  %284 = vmatpush.xpose.msra.mxu0 0.0
  %285 = vmatpush.xpose.msra.mxu0 0.0
  %286 = vmatpush.xpose.msra.mxu0 0.0
  %287 = vmatpush.xpose.msra.mxu0 0.0
  %288 = vmatpush.xpose.msra.mxu0 0.0
  %289 = vmatpush.xpose.msra.mxu0 0.0
  %290 = vmatpush.xpose.msra.mxu0 0.0
  %291 = vmatpush.xpose.msra.mxu0 0.0
  %292 = vmatpush.xpose.msra.mxu0 0.0
  %293 = vmatpush.xpose.msra.mxu0 %v276
  %294 = vmatmul.f32.gmra.mxu0 %v274
  %v295 = vpop.f32.mrf.mxu0
  %v296 = vadd.f32 %v184, %v295
  %297 = vdwg.mxu0
  %299 = vrot.lane.b32.xlu0 %v150, 120
  %v300 = vpop.permute.xlu0 %299
  %v301 = vsel %vm192, %v150, 0
  %v303 = vsel %vm192, %v300, 0
  %305 = vmatpush.xpose.msra.mxu0 0.0
  %306 = vmatpush.xpose.msra.mxu0 0.0
  %307 = vmatpush.xpose.msra.mxu0 0.0
  %308 = vmatpush.xpose.msra.mxu0 0.0
  %309 = vmatpush.xpose.msra.mxu0 0.0
  %310 = vmatpush.xpose.msra.mxu0 0.0
  %311 = vmatpush.xpose.msra.mxu0 0.0
  %312 = vmatpush.xpose.msra.mxu0 0.0
  %313 = vmatpush.xpose.msra.mxu0 0.0
  %314 = vmatpush.xpose.msra.mxu0 0.0
  %315 = vmatpush.xpose.msra.mxu0 0.0
  %316 = vmatpush.xpose.msra.mxu0 0.0
  %317 = vmatpush.xpose.msra.mxu0 0.0
  %318 = vmatpush.xpose.msra.mxu0 0.0
  %319 = vmatpush.xpose.msra.mxu0 0.0
  %320 = vmatpush.xpose.msra.mxu0 %v303
  %321 = vmatmul.f32.gmra.mxu0 %v301
  %v322 = vpop.f32.mrf.mxu0
  %v323 = vadd.f32 %v185, %v322
  %324 = vdwg.mxu0
  %326 = vrot.lane.b32.xlu0 %v153, 120
  %v327 = vpop.permute.xlu0 %326
  %v328 = vsel %vm192, %v153, 0
  %v330 = vsel %vm192, %v327, 0
  %332 = vmatpush.xpose.msra.mxu0 0.0
  %333 = vmatpush.xpose.msra.mxu0 0.0
  %334 = vmatpush.xpose.msra.mxu0 0.0
  %335 = vmatpush.xpose.msra.mxu0 0.0
  %336 = vmatpush.xpose.msra.mxu0 0.0
  %337 = vmatpush.xpose.msra.mxu0 0.0
  %338 = vmatpush.xpose.msra.mxu0 0.0
  %339 = vmatpush.xpose.msra.mxu0 0.0
  %340 = vmatpush.xpose.msra.mxu0 0.0
  %341 = vmatpush.xpose.msra.mxu0 0.0
  %342 = vmatpush.xpose.msra.mxu0 0.0
  %343 = vmatpush.xpose.msra.mxu0 0.0
  %344 = vmatpush.xpose.msra.mxu0 0.0
  %345 = vmatpush.xpose.msra.mxu0 0.0
  %346 = vmatpush.xpose.msra.mxu0 0.0
  %347 = vmatpush.xpose.msra.mxu0 %v330
  %348 = vmatmul.f32.gmra.mxu0 %v328
  %v349 = vpop.f32.mrf.mxu0
  %v350 = vadd.f32 %v186, %v349
  %351 = vdwg.mxu0
  %353 = vrot.lane.b32.xlu0 %v173, 120
  %v354 = vpop.permute.xlu0 %353
  %v355 = vsel %vm192, %v173, 0
  %v357 = vsel %vm192, %v354, 0
  %359 = vmatpush.xpose.msra.mxu0 0.0
  %360 = vmatpush.xpose.msra.mxu0 0.0
  %361 = vmatpush.xpose.msra.mxu0 0.0
  %362 = vmatpush.xpose.msra.mxu0 0.0
  %363 = vmatpush.xpose.msra.mxu0 0.0
  %364 = vmatpush.xpose.msra.mxu0 0.0
  %365 = vmatpush.xpose.msra.mxu0 0.0
  %366 = vmatpush.xpose.msra.mxu0 0.0
  %367 = vmatpush.xpose.msra.mxu0 0.0
  %368 = vmatpush.xpose.msra.mxu0 0.0
  %369 = vmatpush.xpose.msra.mxu0 0.0
  %370 = vmatpush.xpose.msra.mxu0 0.0
  %371 = vmatpush.xpose.msra.mxu0 0.0
  %372 = vmatpush.xpose.msra.mxu0 0.0
  %373 = vmatpush.xpose.msra.mxu0 0.0
  %374 = vmatpush.xpose.msra.mxu0 %v357
  %375 = vmatmul.f32.gmra.mxu0 %v355
  %v376 = vpop.f32.mrf.mxu0
  %v377 = vadd.f32 %v187, %v376
  %378 = vdwg.mxu0
  %380 = vrot.lane.b32.xlu0 %v176, 120
  %v381 = vpop.permute.xlu0 %380
  %v382 = vsel %vm192, %v176, 0
  %v384 = vsel %vm192, %v381, 0
  %386 = vmatpush.xpose.msra.mxu0 0.0
  %387 = vmatpush.xpose.msra.mxu0 0.0
  %388 = vmatpush.xpose.msra.mxu0 0.0
  %389 = vmatpush.xpose.msra.mxu0 0.0
  %390 = vmatpush.xpose.msra.mxu0 0.0
  %391 = vmatpush.xpose.msra.mxu0 0.0
  %392 = vmatpush.xpose.msra.mxu0 0.0
  %393 = vmatpush.xpose.msra.mxu0 0.0
  %394 = vmatpush.xpose.msra.mxu0 0.0
  %395 = vmatpush.xpose.msra.mxu0 0.0
  %396 = vmatpush.xpose.msra.mxu0 0.0
  %397 = vmatpush.xpose.msra.mxu0 0.0
  %398 = vmatpush.xpose.msra.mxu0 0.0
  %399 = vmatpush.xpose.msra.mxu0 0.0
  %400 = vmatpush.xpose.msra.mxu0 0.0
  %401 = vmatpush.xpose.msra.mxu0 %v384
  %402 = vmatmul.f32.gmra.mxu0 %v382
  %v403 = vpop.f32.mrf.mxu0
  %v404 = vadd.f32 %v188, %v403
  %405 = vdwg.mxu0
  %v406 = vperm.slane %v178, 0
  %v407 = vperm.slane %v180, 0
  %v410 = vadd.f32 %v215, %v406
  %v411 = vadd.f32 %v242, %v407
  %v412 = vadd.f32 %v269, %v406
  %v413 = vadd.f32 %v296, %v407
  %v414 = vadd.f32 %v323, %v406
  %v415 = vadd.f32 %v350, %v407
  %v416 = vadd.f32 %v377, %v406
  %v417 = vadd.f32 %v404, %v407
  %v418 = vsel %vm192, %v410, -inf
  %419 = vmax.xlane.f32.xlu0 %v418
  %v420 = vpop.xlane.xlu0 %419
  %v421 = vsel %vm192, %v411, -inf
  %422 = vmax.xlane.f32.xlu0 %v421
  %v423 = vpop.xlane.xlu0 %422
  %v424 = vsel %vm192, %v412, -inf
  %425 = vmax.xlane.f32.xlu0 %v424
  %v426 = vpop.xlane.xlu0 %425
  %v427 = vsel %vm192, %v413, -inf
  %428 = vmax.xlane.f32.xlu0 %v427
  %v429 = vpop.xlane.xlu0 %428
  %v430 = vsel %vm192, %v414, -inf
  %431 = vmax.xlane.f32.xlu0 %v430
  %v432 = vpop.xlane.xlu0 %431
  %v433 = vsel %vm192, %v415, -inf
  %434 = vmax.xlane.f32.xlu0 %v433
  %v435 = vpop.xlane.xlu0 %434
  %v436 = vsel %vm192, %v416, -inf
  %437 = vmax.xlane.f32.xlu0 %v436
  %v438 = vpop.xlane.xlu0 %437
  %v439 = vsel %vm192, %v417, -inf
  %440 = vmax.xlane.f32.xlu0 %v439
  %v441 = vpop.xlane.xlu0 %440
  %v442 = vsub.f32 %v410, %v420
  %v443 = vsub.f32 %v411, %v423
  %v444 = vsub.f32 %v412, %v426
  %v445 = vsub.f32 %v413, %v429
  %v446 = vsub.f32 %v414, %v432
  %v447 = vsub.f32 %v415, %v435
  %v448 = vsub.f32 %v416, %v438
  %v449 = vsub.f32 %v417, %v441
  %v450 = vmul.f32 %v442, 1.442695
  %v451 = vpow.pop %v450
  %v452 = vmul.f32 %v443, 1.442695
  %v453 = vpow.pop %v452
  %v454 = vmul.f32 %v444, 1.442695
  %v455 = vpow.pop %v454
  %v456 = vmul.f32 %v445, 1.442695
  %v457 = vpow.pop %v456
  %v458 = vmul.f32 %v446, 1.442695
  %v459 = vpow.pop %v458
  %v460 = vmul.f32 %v447, 1.442695
  %v461 = vpow.pop %v460
  %v462 = vmul.f32 %v448, 1.442695
  %v463 = vpow.pop %v462
  %v464 = vmul.f32 %v449, 1.442695
  %v465 = vpow.pop %v464
  %v466 = vsel %vm192, %v451, 0.0
  %467 = vadd.xlane.f32.xlu0 %v466
  %v468 = vpop.xlane.xlu0 %467
  %v469 = vsel %vm192, %v453, 0.0
  %470 = vadd.xlane.f32.xlu0 %v469
  %v471 = vpop.xlane.xlu0 %470
  %v472 = vsel %vm192, %v455, 0.0
  %473 = vadd.xlane.f32.xlu0 %v472
  %v474 = vpop.xlane.xlu0 %473
  %v475 = vsel %vm192, %v457, 0.0
  %476 = vadd.xlane.f32.xlu0 %v475
  %v477 = vpop.xlane.xlu0 %476
  %v478 = vsel %vm192, %v459, 0.0
  %479 = vadd.xlane.f32.xlu0 %v478
  %v480 = vpop.xlane.xlu0 %479
  %v481 = vsel %vm192, %v461, 0.0
  %482 = vadd.xlane.f32.xlu0 %v481
  %v483 = vpop.xlane.xlu0 %482
  %v484 = vsel %vm192, %v463, 0.0
  %485 = vadd.xlane.f32.xlu0 %v484
  %v486 = vpop.xlane.xlu0 %485
  %v487 = vsel %vm192, %v465, 0.0
  %488 = vadd.xlane.f32.xlu0 %v487
  %v489 = vpop.xlane.xlu0 %488
  %v490 = vrcp.pop %v468
  %v491 = vmul.f32 %v468, %v490
  %v492 = vsub.f32 1.0, %v491
  %v493 = vmul.f32 %v490, %v492
  %v494 = vadd.f32 %v490, %v493
  %vm495 = vweird.f32 %v468
  %vm496 = vweird.f32 %v490
  %vm497 = vmor %vm495, %vm496
  %v498 = vsel %vm497, %v490, %v494
  %v499 = vand.u32 2147483647, %v468
  %vm500 = vcmp.eq.f32.partialorder %v499, 8.507059e+37
  %v501 = vand.u32 %v468, 2147483648
  %v502 = vor.u32 1.1754944e-38, %v501
  %v503 = vsel %vm500, %v502, %v498
  %v504 = vrcp.pop %v471
  %v505 = vmul.f32 %v471, %v504
  %v506 = vsub.f32 1.0, %v505
  %v507 = vmul.f32 %v504, %v506
  %v508 = vadd.f32 %v504, %v507
  %vm509 = vweird.f32 %v471
  %vm510 = vweird.f32 %v504
  %vm511 = vmor %vm509, %vm510
  %v512 = vsel %vm511, %v504, %v508
  %v513 = vand.u32 2147483647, %v471
  %vm514 = vcmp.eq.f32.partialorder %v513, 8.507059e+37
  %v515 = vand.u32 %v471, 2147483648
  %v516 = vor.u32 1.1754944e-38, %v515
  %v517 = vsel %vm514, %v516, %v512
  %v518 = vrcp.pop %v474
  %v519 = vmul.f32 %v474, %v518
  %v520 = vsub.f32 1.0, %v519
  %v521 = vmul.f32 %v518, %v520
  %v522 = vadd.f32 %v518, %v521
  %vm523 = vweird.f32 %v474
  %vm524 = vweird.f32 %v518
  %vm525 = vmor %vm523, %vm524
  %v526 = vsel %vm525, %v518, %v522
  %v527 = vand.u32 2147483647, %v474
  %vm528 = vcmp.eq.f32.partialorder %v527, 8.507059e+37
  %v529 = vand.u32 %v474, 2147483648
  %v530 = vor.u32 1.1754944e-38, %v529
  %v531 = vsel %vm528, %v530, %v526
  %v532 = vrcp.pop %v477
  %v533 = vmul.f32 %v477, %v532
  %v534 = vsub.f32 1.0, %v533
  %v535 = vmul.f32 %v532, %v534
  %v536 = vadd.f32 %v532, %v535
  %vm537 = vweird.f32 %v477
  %vm538 = vweird.f32 %v532
  %vm539 = vmor %vm537, %vm538
  %v540 = vsel %vm539, %v532, %v536
  %v541 = vand.u32 2147483647, %v477
  %vm542 = vcmp.eq.f32.partialorder %v541, 8.507059e+37
  %v543 = vand.u32 %v477, 2147483648
  %v544 = vor.u32 1.1754944e-38, %v543
  %v545 = vsel %vm542, %v544, %v540
  %v546 = vrcp.pop %v480
  %v547 = vmul.f32 %v480, %v546
  %v548 = vsub.f32 1.0, %v547
  %v549 = vmul.f32 %v546, %v548
  %v550 = vadd.f32 %v546, %v549
  %vm551 = vweird.f32 %v480
  %vm552 = vweird.f32 %v546
  %vm553 = vmor %vm551, %vm552
  %v554 = vsel %vm553, %v546, %v550
  %v555 = vand.u32 2147483647, %v480
  %vm556 = vcmp.eq.f32.partialorder %v555, 8.507059e+37
  %v557 = vand.u32 %v480, 2147483648
  %v558 = vor.u32 1.1754944e-38, %v557
  %v559 = vsel %vm556, %v558, %v554
  %v560 = vrcp.pop %v483
  %v561 = vmul.f32 %v483, %v560
  %v562 = vsub.f32 1.0, %v561
  %v563 = vmul.f32 %v560, %v562
  %v564 = vadd.f32 %v560, %v563
  %vm565 = vweird.f32 %v483
  %vm566 = vweird.f32 %v560
  %vm567 = vmor %vm565, %vm566
  %v568 = vsel %vm567, %v560, %v564
  %v569 = vand.u32 2147483647, %v483
  %vm570 = vcmp.eq.f32.partialorder %v569, 8.507059e+37
  %v571 = vand.u32 %v483, 2147483648
  %v572 = vor.u32 1.1754944e-38, %v571
  %v573 = vsel %vm570, %v572, %v568
  %v574 = vrcp.pop %v486
  %v575 = vmul.f32 %v486, %v574
  %v576 = vsub.f32 1.0, %v575
  %v577 = vmul.f32 %v574, %v576
  %v578 = vadd.f32 %v574, %v577
  %vm579 = vweird.f32 %v486
  %vm580 = vweird.f32 %v574
  %vm581 = vmor %vm579, %vm580
  %v582 = vsel %vm581, %v574, %v578
  %v583 = vand.u32 2147483647, %v486
  %vm584 = vcmp.eq.f32.partialorder %v583, 8.507059e+37
  %v585 = vand.u32 %v486, 2147483648
  %v586 = vor.u32 1.1754944e-38, %v585
  %v587 = vsel %vm584, %v586, %v582
  %v588 = vrcp.pop %v489
  %v589 = vmul.f32 %v489, %v588
  %v590 = vsub.f32 1.0, %v589
  %v591 = vmul.f32 %v588, %v590
  %v592 = vadd.f32 %v588, %v591
  %vm593 = vweird.f32 %v489
  %vm594 = vweird.f32 %v588
  %vm595 = vmor %vm593, %vm594
  %v596 = vsel %vm595, %v588, %v592
  %v597 = vand.u32 2147483647, %v489
  %vm598 = vcmp.eq.f32.partialorder %v597, 8.507059e+37
  %v599 = vand.u32 %v489, 2147483648
  %v600 = vor.u32 1.1754944e-38, %v599
  %v601 = vsel %vm598, %v600, %v596
  %v602 = vmul.f32 %v451, %v503
  %v603 = vmul.f32 %v453, %v517
  %v604 = vmul.f32 %v455, %v531
  %v605 = vmul.f32 %v457, %v545
  %v606 = vmul.f32 %v459, %v559
  %v607 = vmul.f32 %v461, %v573
  %v608 = vmul.f32 %v463, %v587
  %v609 = vmul.f32 %v465, %v601
  %610 = vrot.lane.b32.xlu0 %v104, 112
  %v611 = vpop.permute.xlu0 %610
  %v614 = vsel %vm192, %v602, 0
  %616 = vmatpush.msra.mxu0 0.0
  %617 = vmatpush.msra.mxu0 0.0
  %618 = vmatpush.msra.mxu0 0.0
  %619 = vmatpush.msra.mxu0 0.0
  %620 = vmatpush.msra.mxu0 0.0
  %621 = vmatpush.msra.mxu0 0.0
  %622 = vmatpush.msra.mxu0 0.0
  %623 = vmatpush.msra.mxu0 0.0
  %624 = vmatpush.msra.mxu0 0.0
  %625 = vmatpush.msra.mxu0 0.0
  %626 = vmatpush.msra.mxu0 0.0
  %627 = vmatpush.msra.mxu0 0.0
  %628 = vmatpush.msra.mxu0 0.0
  %629 = vmatpush.msra.mxu0 0.0
  %630 = vmatpush.msra.mxu0 0.0
  %631 = vmatpush.msra.mxu0 %v611
  %632 = vmatmul.f32.gmra.mxu0 %v614
  %v633 = vpop.f32.mrf.mxu0
  %v634 = vadd.f32 0.0, %v633
  %635 = vdwg.mxu0
  %636 = vrot.lane.b32.xlu0 %v107, 112
  %v637 = vpop.permute.xlu0 %636
  %v640 = vsel %vm192, %v603, 0
  %642 = vmatpush.msra.mxu0 0.0
  %643 = vmatpush.msra.mxu0 0.0
  %644 = vmatpush.msra.mxu0 0.0
  %645 = vmatpush.msra.mxu0 0.0
  %646 = vmatpush.msra.mxu0 0.0
  %647 = vmatpush.msra.mxu0 0.0
  %648 = vmatpush.msra.mxu0 0.0
  %649 = vmatpush.msra.mxu0 0.0
  %650 = vmatpush.msra.mxu0 0.0
  %651 = vmatpush.msra.mxu0 0.0
  %652 = vmatpush.msra.mxu0 0.0
  %653 = vmatpush.msra.mxu0 0.0
  %654 = vmatpush.msra.mxu0 0.0
  %655 = vmatpush.msra.mxu0 0.0
  %656 = vmatpush.msra.mxu0 0.0
  %657 = vmatpush.msra.mxu0 %v637
  %658 = vmatmul.f32.gmra.mxu0 %v640
  %v659 = vpop.f32.mrf.mxu0
  %v660 = vadd.f32 0.0, %v659
  %661 = vdwg.mxu0
  %662 = vrot.lane.b32.xlu0 %v127, 112
  %v663 = vpop.permute.xlu0 %662
  %v666 = vsel %vm192, %v604, 0
  %668 = vmatpush.msra.mxu0 0.0
  %669 = vmatpush.msra.mxu0 0.0
  %670 = vmatpush.msra.mxu0 0.0
  %671 = vmatpush.msra.mxu0 0.0
  %672 = vmatpush.msra.mxu0 0.0
  %673 = vmatpush.msra.mxu0 0.0
  %674 = vmatpush.msra.mxu0 0.0
  %675 = vmatpush.msra.mxu0 0.0
  %676 = vmatpush.msra.mxu0 0.0
  %677 = vmatpush.msra.mxu0 0.0
  %678 = vmatpush.msra.mxu0 0.0
  %679 = vmatpush.msra.mxu0 0.0
  %680 = vmatpush.msra.mxu0 0.0
  %681 = vmatpush.msra.mxu0 0.0
  %682 = vmatpush.msra.mxu0 0.0
  %683 = vmatpush.msra.mxu0 %v663
  %684 = vmatmul.f32.gmra.mxu0 %v666
  %v685 = vpop.f32.mrf.mxu0
  %v686 = vadd.f32 0.0, %v685
  %687 = vdwg.mxu0
  %688 = vrot.lane.b32.xlu0 %v130, 112
  %v689 = vpop.permute.xlu0 %688
  %v692 = vsel %vm192, %v605, 0
  %694 = vmatpush.msra.mxu0 0.0
  %695 = vmatpush.msra.mxu0 0.0
  %696 = vmatpush.msra.mxu0 0.0
  %697 = vmatpush.msra.mxu0 0.0
  %698 = vmatpush.msra.mxu0 0.0
  %699 = vmatpush.msra.mxu0 0.0
  %700 = vmatpush.msra.mxu0 0.0
  %701 = vmatpush.msra.mxu0 0.0
  %702 = vmatpush.msra.mxu0 0.0
  %703 = vmatpush.msra.mxu0 0.0
  %704 = vmatpush.msra.mxu0 0.0
  %705 = vmatpush.msra.mxu0 0.0
  %706 = vmatpush.msra.mxu0 0.0
  %707 = vmatpush.msra.mxu0 0.0
  %708 = vmatpush.msra.mxu0 0.0
  %709 = vmatpush.msra.mxu0 %v689
  %710 = vmatmul.f32.gmra.mxu0 %v692
  %v711 = vpop.f32.mrf.mxu0
  %v712 = vadd.f32 0.0, %v711
  %713 = vdwg.mxu0
  %714 = vrot.lane.b32.xlu0 %v150, 112
  %v715 = vpop.permute.xlu0 %714
  %v718 = vsel %vm192, %v606, 0
  %720 = vmatpush.msra.mxu0 0.0
  %721 = vmatpush.msra.mxu0 0.0
  %722 = vmatpush.msra.mxu0 0.0
  %723 = vmatpush.msra.mxu0 0.0
  %724 = vmatpush.msra.mxu0 0.0
  %725 = vmatpush.msra.mxu0 0.0
  %726 = vmatpush.msra.mxu0 0.0
  %727 = vmatpush.msra.mxu0 0.0
  %728 = vmatpush.msra.mxu0 0.0
  %729 = vmatpush.msra.mxu0 0.0
  %730 = vmatpush.msra.mxu0 0.0
  %731 = vmatpush.msra.mxu0 0.0
  %732 = vmatpush.msra.mxu0 0.0
  %733 = vmatpush.msra.mxu0 0.0
  %734 = vmatpush.msra.mxu0 0.0
  %735 = vmatpush.msra.mxu0 %v715
  %736 = vmatmul.f32.gmra.mxu0 %v718
  %v737 = vpop.f32.mrf.mxu0
  %v738 = vadd.f32 0.0, %v737
  %739 = vdwg.mxu0
  %740 = vrot.lane.b32.xlu0 %v153, 112
  %v741 = vpop.permute.xlu0 %740
  %v744 = vsel %vm192, %v607, 0
  %746 = vmatpush.msra.mxu0 0.0
  %747 = vmatpush.msra.mxu0 0.0
  %748 = vmatpush.msra.mxu0 0.0
  %749 = vmatpush.msra.mxu0 0.0
  %750 = vmatpush.msra.mxu0 0.0
  %751 = vmatpush.msra.mxu0 0.0
  %752 = vmatpush.msra.mxu0 0.0
  %753 = vmatpush.msra.mxu0 0.0
  %754 = vmatpush.msra.mxu0 0.0
  %755 = vmatpush.msra.mxu0 0.0
  %756 = vmatpush.msra.mxu0 0.0
  %757 = vmatpush.msra.mxu0 0.0
  %758 = vmatpush.msra.mxu0 0.0
  %759 = vmatpush.msra.mxu0 0.0
  %760 = vmatpush.msra.mxu0 0.0
  %761 = vmatpush.msra.mxu0 %v741
  %762 = vmatmul.f32.gmra.mxu0 %v744
  %v763 = vpop.f32.mrf.mxu0
  %v764 = vadd.f32 0.0, %v763
  %765 = vdwg.mxu0
  %766 = vrot.lane.b32.xlu0 %v173, 112
  %v767 = vpop.permute.xlu0 %766
  %v770 = vsel %vm192, %v608, 0
  %772 = vmatpush.msra.mxu0 0.0
  %773 = vmatpush.msra.mxu0 0.0
  %774 = vmatpush.msra.mxu0 0.0
  %775 = vmatpush.msra.mxu0 0.0
  %776 = vmatpush.msra.mxu0 0.0
  %777 = vmatpush.msra.mxu0 0.0
  %778 = vmatpush.msra.mxu0 0.0
  %779 = vmatpush.msra.mxu0 0.0
  %780 = vmatpush.msra.mxu0 0.0
  %781 = vmatpush.msra.mxu0 0.0
  %782 = vmatpush.msra.mxu0 0.0
  %783 = vmatpush.msra.mxu0 0.0
  %784 = vmatpush.msra.mxu0 0.0
  %785 = vmatpush.msra.mxu0 0.0
  %786 = vmatpush.msra.mxu0 0.0
  %787 = vmatpush.msra.mxu0 %v767
  %788 = vmatmul.f32.gmra.mxu0 %v770
  %v789 = vpop.f32.mrf.mxu0
  %v790 = vadd.f32 0.0, %v789
  %791 = vdwg.mxu0
  %792 = vrot.lane.b32.xlu0 %v176, 112
  %v793 = vpop.permute.xlu0 %792
  %v796 = vsel %vm192, %v609, 0
  %798 = vmatpush.msra.mxu0 0.0
  %799 = vmatpush.msra.mxu0 0.0
  %800 = vmatpush.msra.mxu0 0.0
  %801 = vmatpush.msra.mxu0 0.0
  %802 = vmatpush.msra.mxu0 0.0
  %803 = vmatpush.msra.mxu0 0.0
  %804 = vmatpush.msra.mxu0 0.0
  %805 = vmatpush.msra.mxu0 0.0
  %806 = vmatpush.msra.mxu0 0.0
  %807 = vmatpush.msra.mxu0 0.0
  %808 = vmatpush.msra.mxu0 0.0
  %809 = vmatpush.msra.mxu0 0.0
  %810 = vmatpush.msra.mxu0 0.0
  %811 = vmatpush.msra.mxu0 0.0
  %812 = vmatpush.msra.mxu0 0.0
  %813 = vmatpush.msra.mxu0 %v793
  %814 = vmatmul.f32.gmra.mxu0 %v796
  %v815 = vpop.f32.mrf.mxu0
  %v816 = vadd.f32 0.0, %v815
  %817 = vdwg.mxu0
  %v818 = vld [vmem:[%s2] sm:$0xff]
  %v819 = vld [vmem:[%s2 + $0x8] sm:$0xff]
  %v820 = vld [vmem:[%s2 + $0x10] sm:$0xff]
  %v821 = vld [vmem:[%s2 + $0x18] sm:$0xff]
  %v822 = vld [vmem:[%s2 + $0x20] sm:$0xff]
  %v823 = vld [vmem:[%s2 + $0x28] sm:$0xff]
  %v824 = vld [vmem:[%s2 + $0x30] sm:$0xff]
  %v825 = vld [vmem:[%s2 + $0x38] sm:$0xff]
  %v827 = vsel %vm192, %v634, 0
  %829 = vmatpush.msra.mxu0 0.0
  %830 = vmatpush.msra.mxu0 0.0
  %831 = vmatpush.msra.mxu0 0.0
  %832 = vmatpush.msra.mxu0 0.0
  %833 = vmatpush.msra.mxu0 0.0
  %834 = vmatpush.msra.mxu0 0.0
  %835 = vmatpush.msra.mxu0 0.0
  %836 = vmatpush.msra.mxu0 0.0
  %837 = vmatpush.msra.mxu0 0.0
  %838 = vmatpush.msra.mxu0 0.0
  %839 = vmatpush.msra.mxu0 0.0
  %840 = vmatpush.msra.mxu0 0.0
  %841 = vmatpush.msra.mxu0 0.0
  %842 = vmatpush.msra.mxu0 0.0
  %843 = vmatpush.msra.mxu0 0.0
  %844 = vmatpush.msra.mxu0 %v818
  %845 = vmatmul.f32.gmra.mxu0 %v827
  %v846 = vpop.f32.mrf.mxu0
  %v847 = vadd.f32 0.0, %v846
  %848 = vdwg.mxu0
  %v850 = vsel %vm192, %v660, 0
  %852 = vmatpush.msra.mxu0 0.0
  %853 = vmatpush.msra.mxu0 0.0
  %854 = vmatpush.msra.mxu0 0.0
  %855 = vmatpush.msra.mxu0 0.0
  %856 = vmatpush.msra.mxu0 0.0
  %857 = vmatpush.msra.mxu0 0.0
  %858 = vmatpush.msra.mxu0 0.0
  %859 = vmatpush.msra.mxu0 0.0
  %860 = vmatpush.msra.mxu0 0.0
  %861 = vmatpush.msra.mxu0 0.0
  %862 = vmatpush.msra.mxu0 0.0
  %863 = vmatpush.msra.mxu0 0.0
  %864 = vmatpush.msra.mxu0 0.0
  %865 = vmatpush.msra.mxu0 0.0
  %866 = vmatpush.msra.mxu0 0.0
  %867 = vmatpush.msra.mxu0 %v819
  %868 = vmatmul.f32.gmra.mxu0 %v850
  %v869 = vpop.f32.mrf.mxu0
  %v870 = vadd.f32 0.0, %v869
  %871 = vdwg.mxu0
  %v873 = vsel %vm192, %v686, 0
  %875 = vmatpush.msra.mxu0 0.0
  %876 = vmatpush.msra.mxu0 0.0
  %877 = vmatpush.msra.mxu0 0.0
  %878 = vmatpush.msra.mxu0 0.0
  %879 = vmatpush.msra.mxu0 0.0
  %880 = vmatpush.msra.mxu0 0.0
  %881 = vmatpush.msra.mxu0 0.0
  %882 = vmatpush.msra.mxu0 0.0
  %883 = vmatpush.msra.mxu0 0.0
  %884 = vmatpush.msra.mxu0 0.0
  %885 = vmatpush.msra.mxu0 0.0
  %886 = vmatpush.msra.mxu0 0.0
  %887 = vmatpush.msra.mxu0 0.0
  %888 = vmatpush.msra.mxu0 0.0
  %889 = vmatpush.msra.mxu0 0.0
  %890 = vmatpush.msra.mxu0 %v820
  %891 = vmatmul.f32.gmra.mxu0 %v873
  %v892 = vpop.f32.mrf.mxu0
  %v893 = vadd.f32 0.0, %v892
  %894 = vdwg.mxu0
  %v896 = vsel %vm192, %v712, 0
  %898 = vmatpush.msra.mxu0 0.0
  %899 = vmatpush.msra.mxu0 0.0
  %900 = vmatpush.msra.mxu0 0.0
  %901 = vmatpush.msra.mxu0 0.0
  %902 = vmatpush.msra.mxu0 0.0
  %903 = vmatpush.msra.mxu0 0.0
  %904 = vmatpush.msra.mxu0 0.0
  %905 = vmatpush.msra.mxu0 0.0
  %906 = vmatpush.msra.mxu0 0.0
  %907 = vmatpush.msra.mxu0 0.0
  %908 = vmatpush.msra.mxu0 0.0
  %909 = vmatpush.msra.mxu0 0.0
  %910 = vmatpush.msra.mxu0 0.0
  %911 = vmatpush.msra.mxu0 0.0
  %912 = vmatpush.msra.mxu0 0.0
  %913 = vmatpush.msra.mxu0 %v821
  %914 = vmatmul.f32.gmra.mxu0 %v896
  %v915 = vpop.f32.mrf.mxu0
  %v916 = vadd.f32 0.0, %v915
  %917 = vdwg.mxu0
  %v919 = vsel %vm192, %v738, 0
  %921 = vmatpush.msra.mxu0 0.0
  %922 = vmatpush.msra.mxu0 0.0
  %923 = vmatpush.msra.mxu0 0.0
  %924 = vmatpush.msra.mxu0 0.0
  %925 = vmatpush.msra.mxu0 0.0
  %926 = vmatpush.msra.mxu0 0.0
  %927 = vmatpush.msra.mxu0 0.0
  %928 = vmatpush.msra.mxu0 0.0
  %929 = vmatpush.msra.mxu0 0.0
  %930 = vmatpush.msra.mxu0 0.0
  %931 = vmatpush.msra.mxu0 0.0
  %932 = vmatpush.msra.mxu0 0.0
  %933 = vmatpush.msra.mxu0 0.0
  %934 = vmatpush.msra.mxu0 0.0
  %935 = vmatpush.msra.mxu0 0.0
  %936 = vmatpush.msra.mxu0 %v822
  %937 = vmatmul.f32.gmra.mxu0 %v919
  %v938 = vpop.f32.mrf.mxu0
  %v939 = vadd.f32 0.0, %v938
  %940 = vdwg.mxu0
  %v942 = vsel %vm192, %v764, 0
  %944 = vmatpush.msra.mxu0 0.0
  %945 = vmatpush.msra.mxu0 0.0
  %946 = vmatpush.msra.mxu0 0.0
  %947 = vmatpush.msra.mxu0 0.0
  %948 = vmatpush.msra.mxu0 0.0
  %949 = vmatpush.msra.mxu0 0.0
  %950 = vmatpush.msra.mxu0 0.0
  %951 = vmatpush.msra.mxu0 0.0
  %952 = vmatpush.msra.mxu0 0.0
  %953 = vmatpush.msra.mxu0 0.0
  %954 = vmatpush.msra.mxu0 0.0
  %955 = vmatpush.msra.mxu0 0.0
  %956 = vmatpush.msra.mxu0 0.0
  %957 = vmatpush.msra.mxu0 0.0
  %958 = vmatpush.msra.mxu0 0.0
  %959 = vmatpush.msra.mxu0 %v823
  %960 = vmatmul.f32.gmra.mxu0 %v942
  %v961 = vpop.f32.mrf.mxu0
  %v962 = vadd.f32 0.0, %v961
  %963 = vdwg.mxu0
  %v965 = vsel %vm192, %v790, 0
  %967 = vmatpush.msra.mxu0 0.0
  %968 = vmatpush.msra.mxu0 0.0
  %969 = vmatpush.msra.mxu0 0.0
  %970 = vmatpush.msra.mxu0 0.0
  %971 = vmatpush.msra.mxu0 0.0
  %972 = vmatpush.msra.mxu0 0.0
  %973 = vmatpush.msra.mxu0 0.0
  %974 = vmatpush.msra.mxu0 0.0
  %975 = vmatpush.msra.mxu0 0.0
  %976 = vmatpush.msra.mxu0 0.0
  %977 = vmatpush.msra.mxu0 0.0
  %978 = vmatpush.msra.mxu0 0.0
  %979 = vmatpush.msra.mxu0 0.0
  %980 = vmatpush.msra.mxu0 0.0
  %981 = vmatpush.msra.mxu0 0.0
  %982 = vmatpush.msra.mxu0 %v824
  %983 = vmatmul.f32.gmra.mxu0 %v965
  %v984 = vpop.f32.mrf.mxu0
  %v985 = vadd.f32 0.0, %v984
  %986 = vdwg.mxu0
  %v988 = vsel %vm192, %v816, 0
  %990 = vmatpush.msra.mxu0 0.0
  %991 = vmatpush.msra.mxu0 0.0
  %992 = vmatpush.msra.mxu0 0.0
  %993 = vmatpush.msra.mxu0 0.0
  %994 = vmatpush.msra.mxu0 0.0
  %995 = vmatpush.msra.mxu0 0.0
  %996 = vmatpush.msra.mxu0 0.0
  %997 = vmatpush.msra.mxu0 0.0
  %998 = vmatpush.msra.mxu0 0.0
  %999 = vmatpush.msra.mxu0 0.0
  %1000 = vmatpush.msra.mxu0 0.0
  %1001 = vmatpush.msra.mxu0 0.0
  %1002 = vmatpush.msra.mxu0 0.0
  %1003 = vmatpush.msra.mxu0 0.0
  %1004 = vmatpush.msra.mxu0 0.0
  %1005 = vmatpush.msra.mxu0 %v825
  %1006 = vmatmul.f32.gmra.mxu0 %v988
  %v1007 = vpop.f32.mrf.mxu0
  %v1008 = vadd.f32 0.0, %v1007
  %1009 = vdwg.mxu0
  %v1010 = vsel %vm24, %v847, 0.0
  %v1011 = vsel %vm24, %v893, 0.0
  %v1012 = vadd.f32 %v1010, %v1011
  %v1013 = vsel %vm24, %v939, 0.0
  %v1014 = vadd.f32 %v1012, %v1013
  %v1015 = vsel %vm24, %v985, 0.0
  %v1016 = vadd.f32 %v1014, %v1015
  %v1017 = vsel %vm24, %v870, 0.0
  %v1018 = vsel %vm24, %v916, 0.0
  %v1019 = vadd.f32 %v1017, %v1018
  %v1020 = vsel %vm24, %v962, 0.0
  %v1021 = vadd.f32 %v1019, %v1020
  %v1022 = vsel %vm24, %v1008, 0.0
  %v1023 = vadd.f32 %v1021, %v1022
  %v1024 = vadd.f32 %v20, %v1016
  %v1025 = vadd.f32 %v21, %v1023
  %1026 = vst.msk [vmem:[%s5] sm:$0xff] %vm24, %v1024
  %1027 = vst.msk [vmem:[%s5 + $0x8] sm:$0xff] %vm24, %v1025
  // Predicated region
  $region22: #{_mrt5_self_attn_fwd.1} parent=0 // pred_check
    _
  $region23: #{_mrt5_self_attn_fwd.1} parent=0 // pred_check_branch
    %1029 = sbr.rel (0) target = $region25
  $region24: #{_mrt5_self_attn_fwd.1} parent=0 // pred_region
    _
  $region25: #{_mrt5_self_attn_fwd.1} parent=0 // pred_fallthru
    _
  // Predicated region
  $region26: #{_mrt5_self_attn_fwd.1} parent=0 // pred_check
    _
  $region27: #{_mrt5_self_attn_fwd.1} parent=0 // pred_check_branch
    %1031 = sbr.rel (0) target = $region29
  $region28: #{_mrt5_self_attn_fwd.1} parent=0 // pred_region
    _
  $region29: #{_mrt5_self_attn_fwd.1} parent=0 // pred_fallthru
    _

</llo_original>
